<compile_context>
chip_gen: v6e
topology: v6e:2x2x1
jax: 0.10.0
libtpu: 0.0.40
codegen_flags: <defaults>
</compile_context>

<pallas_src>
import functools

import jax
import jax.numpy as jnp
from jax.experimental import pallas as pl
from jax.experimental.pallas import tpu as pltpu

SELU_ALPHA = 1.6732632423543772
SELU_SCALE = 1.0507009873554805


def _selu(x):
    # exp argument clamped so the (discarded) positive branch never produces inf.
    return SELU_SCALE * jnp.where(
        x > 0, x, SELU_ALPHA * (jnp.exp(jnp.minimum(x, 0.0)) - 1.0))


def _text_project_kernel(hid_ref, w1_ref, b1_ref, w2_ref, b2_ref,
                         out_ref, acc_ref, *, seq_len):
    # hid_ref: (B, TS, H) sequence tile      acc_ref: (B, H) f32 scratch
    # w1_ref: (H, D1)  b1_ref: (1, D1)  w2_ref: (D1, D2)  b2_ref: (1, D2)
    # out_ref: (B, D2)
    s = pl.program_id(0)

    @pl.when(s == 0)
    def _init():
        acc_ref[...] = jnp.zeros_like(acc_ref)

    # Partial sum over this sequence tile (f32 accumulation, overlapped with
    # the next tile's DMA by the pipeline).
    acc_ref[...] += jnp.sum(hid_ref[...].astype(jnp.float32), axis=1)

    @pl.when(s == pl.num_programs(0) - 1)
    def _finalize():
        pooled = acc_ref[...] * (1.0 / float(seq_len))            # (B, H) f32

        # projector_1 + SELU (MXU matmul, f32 accumulation).
        z1 = jnp.dot(pooled.astype(w1_ref.dtype), w1_ref[...],
                     preferred_element_type=jnp.float32) + b1_ref[...]
        a1 = _selu(z1)

        # Dropout(p=0.1) -> identity at inference time.

        # projector_2.
        z2 = jnp.dot(a1.astype(w2_ref.dtype), w2_ref[...],
                     preferred_element_type=jnp.float32) + b2_ref[...]
        out_ref[...] = z2.astype(out_ref.dtype)


def _pick_seq_tile(S, B, H, itemsize, budget_bytes=8 << 20):
    """Largest seq tile (multiple of 8, dividing S) whose buffer fits budget."""
    max_ts = max(1, budget_bytes // (B * H * itemsize))
    if S <= max_ts:
        return S
    best = None
    ts = 8
    while ts <= max_ts:
        if S % ts == 0:
            best = ts
        ts += 8
    return best if best is not None else S


def text_project_forward(hidden, w1, b1, w2, b2, *, seq_tile=None):
    """hidden: (B, S, H); w1: (H, D1); w2: (D1, D2). Returns (B, D2) float32."""
    B, S, H = hidden.shape
    D1 = w1.shape[1]
    D2 = w2.shape[1]

    ts = seq_tile if seq_tile is not None else _pick_seq_tile(
        S, B, H, hidden.dtype.itemsize)
    assert S % ts == 0, "sequence tile must divide the sequence length"
    n_seq = S // ts

    kernel = functools.partial(_text_project_kernel, seq_len=S)

    bytes_accessed = (hidden.size * hidden.dtype.itemsize
                      + w1.size * w1.dtype.itemsize
                      + w2.size * w2.dtype.itemsize
                      + b1.size * b1.dtype.itemsize
                      + b2.size * b2.dtype.itemsize
                      + B * D2 * 4)
    cost = pl.CostEstimate(
        flops=2 * B * S * H + 2 * B * (H * D1 + D1 * D2),
        transcendentals=B * D1,
        bytes_accessed=bytes_accessed)

    return pl.pallas_call(
        kernel,
        out_shape=jax.ShapeDtypeStruct((B, D2), jnp.float32),
        grid_spec=pltpu.PrefetchScalarGridSpec(
            num_scalar_prefetch=0,
            grid=(n_seq,),
            in_specs=[
                # sequence-tiled hidden states (double-buffered by pipeline)
                pl.BlockSpec((B, ts, H), lambda s: (0, s, 0)),
                # weights / biases: constant index -> DMA'd once, VMEM-resident
                pl.BlockSpec((H, D1), lambda s: (0, 0)),
                pl.BlockSpec((1, D1), lambda s: (0, 0)),
                pl.BlockSpec((D1, D2), lambda s: (0, 0)),
                pl.BlockSpec((1, D2), lambda s: (0, 0)),
            ],
            out_specs=pl.BlockSpec((B, D2), lambda s: (0, 0)),
            scratch_shapes=[pltpu.VMEM((B, H), jnp.float32)],
        ),
        compiler_params=pltpu.CompilerParams(
            dimension_semantics=("arbitrary",)),  # seq axis is a reduction
        cost_estimate=cost,
    )(hidden, w1, b1, w2, b2)


if __name__ == "__main__":
    # Small shapes consistent with the forward:
    #   batch B=2, seq S=16 (tiled by 8), text-model hidden size H = 256.
    B, S, H = 2, 16, 256
    D1, D2 = 512, 256

    key = jax.random.PRNGKey(0)
    k_hid, k_w1, k_b1, k_w2, k_b2 = jax.random.split(key, 5)

    # Deterministic synthetic "Longformer last_hidden_state".
    hidden = jax.random.normal(k_hid, (B, S, H), dtype=jnp.float32)

    # Parameters: Linear weights stored as (in, out); bf16 weights, f32 biases.
    w1 = (jax.random.normal(k_w1, (H, D1), dtype=jnp.float32)
          * (1.0 / jnp.sqrt(H))).astype(jnp.bfloat16)
    b1 = jax.random.normal(k_b1, (1, D1), dtype=jnp.float32) * 0.01
    w2 = (jax.random.normal(k_w2, (D1, D2), dtype=jnp.float32)
          * (1.0 / jnp.sqrt(D1))).astype(jnp.bfloat16)
    b2 = jax.random.normal(k_b2, (1, D2), dtype=jnp.float32) * 0.01

    # seq_tile=8 -> grid of 2 sequence steps (exercises the accumulator path).
    out = text_project_forward(hidden, w1, b1, w2, b2, seq_tile=8)
    out = jax.block_until_ready(out)

    # Pure-JAX reference using the same bf16 weights / f32 accumulation.
    pooled_ref = jnp.mean(hidden, axis=1)
    z1_ref = jnp.dot(pooled_ref.astype(jnp.bfloat16), w1,
                     preferred_element_type=jnp.float32) + b1
    a1_ref = _selu(z1_ref)
    ref = jnp.dot(a1_ref.astype(jnp.bfloat16), w2,
                  preferred_element_type=jnp.float32) + b2

    assert out.shape == (B, D2)
    assert jnp.allclose(out, ref, atol=5e-3, rtol=5e-3), (
        float(jnp.max(jnp.abs(out - ref))))

    print("KERNEL_OK")
</pallas_src>

<mosaic_0001>
module attributes {stable_mosaic.version = 11 : i64} {
  func.func @_text_project_kernel(%arg0: i32, %arg1: memref<2x8x256xf32, #tpu.memory_space<vmem>>, %arg2: memref<256x512xbf16, #tpu.memory_space<vmem>>, %arg3: memref<1x512xf32, #tpu.memory_space<vmem>>, %arg4: memref<512x256xbf16, #tpu.memory_space<vmem>>, %arg5: memref<1x256xf32, #tpu.memory_space<vmem>>, %arg6: memref<2x256xf32, #tpu.memory_space<vmem>>, %arg7: memref<2x256xf32, #tpu.memory_space<vmem>>) attributes {dimension_semantics = [#tpu.dimension_semantics<arbitrary>], iteration_bounds = array<i64: 2>, scalar_prefetch = 0 : i64, scratch_operands = 1 : i64, tpu.core_type = #tpu.core_type<tc>, window_params = [{transform_indices = @transform_0, window_bounds = array<i64: 2, 8, 256>}, {pipeline_mode = #tpu.pipeline_mode<synchronous>, transform_indices = @transform_1, window_bounds = array<i64: 256, 512>}, {pipeline_mode = #tpu.pipeline_mode<synchronous>, transform_indices = @transform_2, window_bounds = array<i64: 1, 512>}, {pipeline_mode = #tpu.pipeline_mode<synchronous>, transform_indices = @transform_3, window_bounds = array<i64: 512, 256>}, {pipeline_mode = #tpu.pipeline_mode<synchronous>, transform_indices = @transform_4, window_bounds = array<i64: 1, 256>}, {pipeline_mode = #tpu.pipeline_mode<synchronous>, transform_indices = @transform_5, window_bounds = array<i64: 2, 256>}]} {
    %c0_i32 = arith.constant 0 : i32
    %0 = arith.cmpi eq, %arg0, %c0_i32 : i32
    %1 = arith.extui %0 : i1 to i32
    %c0_i32_0 = arith.constant 0 : i32
    %2 = arith.cmpi ne, %1, %c0_i32_0 : i32
    scf.if %2 {
      %cst_8 = arith.constant 0.000000e+00 : f32
      %11 = vector.broadcast %cst_8 : f32 to vector<2x256xf32>
      %c0_9 = arith.constant 0 : index
      %c0_10 = arith.constant 0 : index
      %12 = vector.load %arg7[%c0_9, %c0_10] : memref<2x256xf32, #tpu.memory_space<vmem>>, vector<2x256xf32>
      tpu.vector_store %arg7[%c0_9, %c0_10], %11 {strides = array<i32>} : memref<2x256xf32, #tpu.memory_space<vmem>>, vector<2x256xf32>,
    } else {
    }
    %c0 = arith.constant 0 : index
    %c0_1 = arith.constant 0 : index
    %3 = vector.load %arg7[%c0, %c0_1] : memref<2x256xf32, #tpu.memory_space<vmem>>, vector<2x256xf32>
    %c0_2 = arith.constant 0 : index
    %c0_3 = arith.constant 0 : index
    %c0_4 = arith.constant 0 : index
    %4 = vector.load %arg1[%c0_2, %c0_3, %c0_4] : memref<2x8x256xf32, #tpu.memory_space<vmem>>, vector<2x8x256xf32>
    %cst = arith.constant dense<0.000000e+00> : vector<2x256xf32>
    %5 = vector.multi_reduction <add>, %4, %cst [1] : vector<2x8x256xf32> to vector<2x256xf32>
    %6 = arith.addf %3, %5 : vector<2x256xf32>
    %c0_5 = arith.constant 0 : index
    %c0_6 = arith.constant 0 : index
    %7 = vector.load %arg7[%c0_5, %c0_6] : memref<2x256xf32, #tpu.memory_space<vmem>>, vector<2x256xf32>
    tpu.vector_store %arg7[%c0_5, %c0_6], %6 {strides = array<i32>} : memref<2x256xf32, #tpu.memory_space<vmem>>, vector<2x256xf32>,
    %c1_i32 = arith.constant 1 : i32
    %8 = arith.cmpi eq, %arg0, %c1_i32 : i32
    %9 = arith.extui %8 : i1 to i32
    %c0_i32_7 = arith.constant 0 : i32
    %10 = arith.cmpi ne, %9, %c0_i32_7 : i32
    scf.if %10 {
      %c0_8 = arith.constant 0 : index
      %c0_9 = arith.constant 0 : index
      %11 = vector.load %arg7[%c0_8, %c0_9] : memref<2x256xf32, #tpu.memory_space<vmem>>, vector<2x256xf32>
      %cst_10 = arith.constant 6.250000e-02 : f32
      %12 = vector.broadcast %cst_10 : f32 to vector<2x256xf32>
      %13 = arith.mulf %11, %12 : vector<2x256xf32>
      %14 = arith.truncf %13 : vector<2x256xf32> to vector<2x256xbf16>
      %c0_11 = arith.constant 0 : index
      %c0_12 = arith.constant 0 : index
      %15 = vector.load %arg2[%c0_11, %c0_12] : memref<256x512xbf16, #tpu.memory_space<vmem>>, vector<256x512xbf16>
      %cst_13 = arith.constant dense<0.000000e+00> : vector<2x512xf32>
      %16 = tpu.matmul %14, %15, %cst_13 {dimension_numbers = #tpu.dot_dimension_numbers<[1], [0], [0], [1], [0, 0, 1, 1], [], []>} : vector<2x256xbf16>, vector<256x512xbf16>, vector<2x512xf32> -> vector<2x512xf32>
      %c0_14 = arith.constant 0 : index
      %c0_15 = arith.constant 0 : index
      %17 = vector.load %arg3[%c0_14, %c0_15] : memref<1x512xf32, #tpu.memory_space<vmem>>, vector<1x512xf32>
      %18 = vector.broadcast %17 : vector<1x512xf32> to vector<2x512xf32>
      %19 = arith.addf %16, %18 : vector<2x512xf32>
      %cst_16 = arith.constant 0.000000e+00 : f32
      %20 = vector.broadcast %cst_16 : f32 to vector<2x512xf32>
      %21 = arith.cmpf ogt, %19, %20 : vector<2x512xf32>
      %cst_17 = arith.constant 0.000000e+00 : f32
      %22 = vector.broadcast %cst_17 : f32 to vector<2x512xf32>
      %23 = arith.minimumf %19, %22 : vector<2x512xf32>
      %24 = math.exp %23 : vector<2x512xf32>
      %cst_18 = arith.constant 1.000000e+00 : f32
      %25 = vector.broadcast %cst_18 : f32 to vector<2x512xf32>
      %26 = arith.subf %24, %25 : vector<2x512xf32>
      %cst_19 = arith.constant 1.67326319 : f32
      %27 = vector.broadcast %cst_19 : f32 to vector<2x512xf32>
      %28 = arith.mulf %27, %26 : vector<2x512xf32>
      %29 = arith.select %21, %19, %28 : vector<2x512xi1>, vector<2x512xf32>
      %cst_20 = arith.constant 1.05070102 : f32
      %30 = vector.broadcast %cst_20 : f32 to vector<2x512xf32>
      %31 = arith.mulf %30, %29 : vector<2x512xf32>
      %32 = arith.truncf %31 : vector<2x512xf32> to vector<2x512xbf16>
      %c0_21 = arith.constant 0 : index
      %c0_22 = arith.constant 0 : index
      %33 = vector.load %arg4[%c0_21, %c0_22] : memref<512x256xbf16, #tpu.memory_space<vmem>>, vector<512x256xbf16>
      %cst_23 = arith.constant dense<0.000000e+00> : vector<2x256xf32>
      %34 = tpu.matmul %32, %33, %cst_23 {dimension_numbers = #tpu.dot_dimension_numbers<[1], [0], [0], [1], [0, 0, 1, 1], [], []>} : vector<2x512xbf16>, vector<512x256xbf16>, vector<2x256xf32> -> vector<2x256xf32>
      %c0_24 = arith.constant 0 : index
      %c0_25 = arith.constant 0 : index
      %35 = vector.load %arg5[%c0_24, %c0_25] : memref<1x256xf32, #tpu.memory_space<vmem>>, vector<1x256xf32>
      %36 = vector.broadcast %35 : vector<1x256xf32> to vector<2x256xf32>
      %37 = arith.addf %34, %36 : vector<2x256xf32>
      %c0_26 = arith.constant 0 : index
      %c0_27 = arith.constant 0 : index
      %38 = vector.load %arg6[%c0_26, %c0_27] : memref<2x256xf32, #tpu.memory_space<vmem>>, vector<2x256xf32>
      tpu.vector_store %arg6[%c0_26, %c0_27], %37 {strides = array<i32>} : memref<2x256xf32, #tpu.memory_space<vmem>>, vector<2x256xf32>,
    } else {
    }
    return
  }
  func.func @transform_0(%arg0: i32) -> (i32, i32, i32) {
    %c0_i32 = arith.constant 0 : i32
    %c0_i32_0 = arith.constant 0 : i32
    %c0_i32_1 = arith.constant 0 : i32
    return %c0_i32, %arg0, %c0_i32_0 : i32, i32, i32
  }
  func.func @transform_1(%arg0: i32) -> (i32, i32) {
    %c0_i32 = arith.constant 0 : i32
    %c0_i32_0 = arith.constant 0 : i32
    %c0_i32_1 = arith.constant 0 : i32
    return %c0_i32, %c0_i32_0 : i32, i32
  }
  func.func @transform_2(%arg0: i32) -> (i32, i32) {
    %c0_i32 = arith.constant 0 : i32
    %c0_i32_0 = arith.constant 0 : i32
    %c0_i32_1 = arith.constant 0 : i32
    return %c0_i32, %c0_i32_0 : i32, i32
  }
  func.func @transform_3(%arg0: i32) -> (i32, i32) {
    %c0_i32 = arith.constant 0 : i32
    %c0_i32_0 = arith.constant 0 : i32
    %c0_i32_1 = arith.constant 0 : i32
    return %c0_i32, %c0_i32_0 : i32, i32
  }
  func.func @transform_4(%arg0: i32) -> (i32, i32) {
    %c0_i32 = arith.constant 0 : i32
    %c0_i32_0 = arith.constant 0 : i32
    %c0_i32_1 = arith.constant 0 : i32
    return %c0_i32, %c0_i32_0 : i32, i32
  }
  func.func @transform_5(%arg0: i32) -> (i32, i32) {
    %c0_i32 = arith.constant 0 : i32
    %c0_i32_0 = arith.constant 0 : i32
    %c0_i32_1 = arith.constant 0 : i32
    return %c0_i32, %c0_i32_0 : i32, i32
  }
}

</mosaic_0001>

<llo_original>
// kernel: tpu_custom_call.1
$region0: #{tpu_custom_call.1}
  #allocation0 [shape = 'u32[]', space=smem, size = 0x4, offset = 0x4, fixed_abs, tag = 'smem constant byte address 0x4 - core index']
  #allocation1 [shape = 'u32[144,128]{1,0:T(1,128)}', space=vmem, size = 0x12000, scoped, tag = 'internal scratch']
  #allocation2 [shape = 'f32[2,256]{1,0:T(2,128)}', space=vmem, size = 0x800, scoped, tag = 'scratch operand']
  %s0 = inlined_call_operand.hbm [shape: f32[2,16,256], index: 0, kind: input, shape index: {}]
  %s1 = inlined_call_operand.hbm [shape: bf16[256,512], index: 1, kind: input, shape index: {}]
  %s2 = inlined_call_operand.hbm [shape: f32[1,512], index: 2, kind: input, shape index: {}]
  %s3 = inlined_call_operand.hbm [shape: bf16[512,256], index: 3, kind: input, shape index: {}]
  %s4 = inlined_call_operand.vmem [shape: f32[1,256], index: 4, kind: input, shape index: {}]
  %s5 = inlined_call_operand.hbm [shape: f32[2,256], index: 5, kind: output, shape index: {}]
  %s6 = sld [smem:[#allocation0]]
  $region77: #{tpu_custom_call.1} parent=0
    _
  %s8 = ssub.s32 1, %s6
  %s9 = scalar_select 0, %s8, %s6
  $region1: #{tpu_custom_call.1} parent=0
    #allocation3 [shape = 'u8[32768]{0}', space=vmem, size = 0x8000, scoped, tag = 'input window, operand 0']
    #allocation4 [shape = 's32[2]{0}', space=sflag, size = 0x8, scoped, tag = 'scoped memory for tpu_custom_call.1']
    #allocation5 [shape = 's32[2]{0}', space=sflag, size = 0x8, scoped, tag = 'scoped memory for tpu_custom_call.1']
    #allocation6 [shape = 'u8[262144]{0}', space=vmem, size = 0x40000, scoped, tag = 'input window, operand 1, single buffered']
    #allocation7 [shape = 's32[1]{0}', space=sflag, size = 0x4, scoped, tag = 'scoped memory for tpu_custom_call.1']
    #allocation8 [shape = 'u8[2048]{0}', space=vmem, size = 0x800, scoped, tag = 'input window, operand 2, single buffered']
    #allocation9 [shape = 'u8[262144]{0}', space=vmem, size = 0x40000, scoped, tag = 'input window, operand 3, single buffered']
    #allocation10 [shape = 's32[1]{0}', space=sflag, size = 0x4, scoped, tag = 'scoped memory for tpu_custom_call.1']
    #allocation11 [shape = 'u8[2048]{0}', space=vmem, size = 0x800, scoped, tag = 'output window, operand 0, single buffered']
    %10 = vsyncpa [#allocation4], 0
    %s11 = scalar_lea.sflag [#allocation4], 1
    %12 = vsyncpa %s11, 0
    %13 = vsyncpa [#allocation7], 0
    %14 = vsyncpa [#allocation10], 0
    %15 = vsyncpa [#allocation5], 0
    loop: start=0, step=1, limit=4
    $region2: #{tpu_custom_call.1} parent=1 // loop_pre_header
      _
    $region3: #{tpu_custom_call.1} parent=1 // loop_header
      %s17 = sphi 0, %s21
      %p18 = scmp.ge.s32.totalorder %s17, 4
      %s27 = sphi 0, %s29
      %s30 = sphi 0, %s27
      %s31 = sphi 0, %s30
      %s47 = sphi 0, %s31
      %s51 = sphi 0, %s51
      %s53 = sphi 0, %s51
      %s54 = sphi 0, %s53
      %s68 = sphi 0, %s54
      %s72 = sphi 0, %s72
      %s74 = sphi 0, %s72
      %s75 = sphi 0, %s74
      %s89 = sphi 0, %s75
      %s93 = sphi 0, %s93
      %s95 = sphi 0, %s93
      %s96 = sphi 0, %s95
      %s110 = sphi 0, %s96
      %s114 = sphi 0, %s114
      %s116 = sphi 0, %s114
      %s117 = sphi 0, %s116
      %s131 = sphi 0, %s117
      %s135 = sphi 0, %s135
      %s137 = sphi 0, %s135
      %s138 = sphi 0, %s137
      %s152 = sphi 0, %s138
    $region4: #{tpu_custom_call.1} parent=1 // loop_header_branch
      %20 = sbr.rel (%p18) target = $region8
    $region5: #{tpu_custom_call.1} parent=1 // loop_body
      %s22 = ssub.s32 %s17, 1
      %s23 = ssub.s32 %s17, 2
      %s24 = sadd.s32 %s17, 1
      %s25 = ssub.s32 %s17, %s24
      %p26 = scmp.eq.s32.totalorder %s25, 0
      %s28 = sadd.s32 %s27, 1
      %s29 = scalar_select %p26, %s27, %s28
      %p32 = pneg %p26
      %p33 = scmp.eq.s32.totalorder %s17, 1
      %p34 = por %p32, %p33
      %p35 = scmp.ne.s32.totalorder %s27, %s30
      %p36 = scmp.eq.s32.totalorder %s17, 0
      %p37 = por %p35, %p36
      %p38 = scmp.ne.s32.totalorder %s27, %s30
      %p39 = scmp.eq.s32.totalorder %s22, 1
      %p40 = por %p38, %p39
      %p41 = scmp.ne.s32.totalorder %s30, %s31
      %p42 = scmp.eq.s32.totalorder %s22, 0
      %p43 = por %p41, %p42
      %p44 = scmp.ne.s32.totalorder %s30, %s31
      %p45 = scmp.eq.s32.totalorder %s23, 1
      %p46 = por %p44, %p45
      %p48 = scmp.ne.s32.totalorder %s31, %s47
      %p49 = scmp.eq.s32.totalorder %s23, 0
      %p50 = por %p48, %p49
      %s52 = sadd.s32 %s51, 1
      %p55 = scmp.eq.s32.totalorder %s17, 1
      %p56 = scmp.ne.s32.totalorder %s51, %s53
      %p57 = scmp.eq.s32.totalorder %s17, 0
      %p58 = por %p56, %p57
      %p59 = scmp.ne.s32.totalorder %s51, %s53
      %p60 = scmp.eq.s32.totalorder %s22, 1
      %p61 = por %p59, %p60
      %p62 = scmp.ne.s32.totalorder %s53, %s54
      %p63 = scmp.eq.s32.totalorder %s22, 0
      %p64 = por %p62, %p63
      %p65 = scmp.ne.s32.totalorder %s53, %s54
      %p66 = scmp.eq.s32.totalorder %s23, 1
      %p67 = por %p65, %p66
      %p69 = scmp.ne.s32.totalorder %s54, %s68
      %p70 = scmp.eq.s32.totalorder %s23, 0
      %p71 = por %p69, %p70
      %s73 = sadd.s32 %s72, 1
      %p76 = scmp.eq.s32.totalorder %s17, 1
      %p77 = scmp.ne.s32.totalorder %s72, %s74
      %p78 = scmp.eq.s32.totalorder %s17, 0
      %p79 = por %p77, %p78
      %p80 = scmp.ne.s32.totalorder %s72, %s74
      %p81 = scmp.eq.s32.totalorder %s22, 1
      %p82 = por %p80, %p81
      %p83 = scmp.ne.s32.totalorder %s74, %s75
      %p84 = scmp.eq.s32.totalorder %s22, 0
      %p85 = por %p83, %p84
      %p86 = scmp.ne.s32.totalorder %s74, %s75
      %p87 = scmp.eq.s32.totalorder %s23, 1
      %p88 = por %p86, %p87
      %p90 = scmp.ne.s32.totalorder %s75, %s89
      %p91 = scmp.eq.s32.totalorder %s23, 0
      %p92 = por %p90, %p91
      %s94 = sadd.s32 %s93, 1
      %p97 = scmp.eq.s32.totalorder %s17, 1
      %p98 = scmp.ne.s32.totalorder %s93, %s95
      %p99 = scmp.eq.s32.totalorder %s17, 0
      %p100 = por %p98, %p99
      %p101 = scmp.ne.s32.totalorder %s93, %s95
      %p102 = scmp.eq.s32.totalorder %s22, 1
      %p103 = por %p101, %p102
      %p104 = scmp.ne.s32.totalorder %s95, %s96
      %p105 = scmp.eq.s32.totalorder %s22, 0
      %p106 = por %p104, %p105
      %p107 = scmp.ne.s32.totalorder %s95, %s96
      %p108 = scmp.eq.s32.totalorder %s23, 1
      %p109 = por %p107, %p108
      %p111 = scmp.ne.s32.totalorder %s96, %s110
      %p112 = scmp.eq.s32.totalorder %s23, 0
      %p113 = por %p111, %p112
      %s115 = sadd.s32 %s114, 1
      %p118 = scmp.eq.s32.totalorder %s17, 1
      %p119 = scmp.ne.s32.totalorder %s114, %s116
      %p120 = scmp.eq.s32.totalorder %s17, 0
      %p121 = por %p119, %p120
      %p122 = scmp.ne.s32.totalorder %s114, %s116
      %p123 = scmp.eq.s32.totalorder %s22, 1
      %p124 = por %p122, %p123
      %p125 = scmp.ne.s32.totalorder %s116, %s117
      %p126 = scmp.eq.s32.totalorder %s22, 0
      %p127 = por %p125, %p126
      %p128 = scmp.ne.s32.totalorder %s116, %s117
      %p129 = scmp.eq.s32.totalorder %s23, 1
      %p130 = por %p128, %p129
      %p132 = scmp.ne.s32.totalorder %s117, %s131
      %p133 = scmp.eq.s32.totalorder %s23, 0
      %p134 = por %p132, %p133
      %s136 = sadd.s32 %s135, 1
      %p139 = scmp.eq.s32.totalorder %s17, 1
      %p140 = scmp.ne.s32.totalorder %s135, %s137
      %p141 = scmp.eq.s32.totalorder %s17, 0
      %p142 = por %p140, %p141
      %p143 = scmp.ne.s32.totalorder %s135, %s137
      %p144 = scmp.eq.s32.totalorder %s22, 1
      %p145 = por %p143, %p144
      %p146 = scmp.ne.s32.totalorder %s137, %s138
      %p147 = scmp.eq.s32.totalorder %s22, 0
      %p148 = por %p146, %p147
      %p149 = scmp.ne.s32.totalorder %s137, %s138
      %p150 = scmp.eq.s32.totalorder %s23, 1
      %p151 = por %p149, %p150
      %p153 = scmp.ne.s32.totalorder %s138, %s152
      %p154 = scmp.eq.s32.totalorder %s23, 0
      %p155 = por %p153, %p154
      %p156 = scmp.le.s32.totalorder 1, %s17
      %p157 = scmp.lt.s32.totalorder %s17, 3
      %p158 = pnand %p156, %p157
      %p159 = pneg %p158
      // Predicated region
      $region9: #{tpu_custom_call.1} parent=5 // pred_check
        _
      $region10: #{tpu_custom_call.1} parent=5 // pred_check_branch
        %161 = sbr.rel (%p158) target = $region12
      $region11: #{tpu_custom_call.1} parent=5 // pred_region
        %s162 = ssub.s32 %s17, 1
        // Predicated region
        $region13: #{tpu_custom_call.1} parent=11 // pred_check
          %p163 = pneg %p64
        $region14: #{tpu_custom_call.1} parent=11 // pred_check_branch
          %165 = sbr.rel (%p163) target = $region16
        $region15: #{tpu_custom_call.1} parent=11 // pred_region
          %s167 = ssub.s32 8192, 8192
          %168 = vsyncadd [#allocation7], %s167
          %s169 = sshll.u32 [#allocation6], 4
          %s170 = int_to_ptr.vmem [resolvable:$true] %s169
          %175 = dma.hbm_to_vmem [thread:$0]  %s1, 8192, %s170, [#allocation7], 256, 256, 16
        $region16: #{tpu_custom_call.1} parent=11 // pred_fallthru
          _
        // Predicated region
        $region17: #{tpu_custom_call.1} parent=11 // pred_check
          %p176 = pneg %p85
        $region18: #{tpu_custom_call.1} parent=11 // pred_check_branch
          %178 = sbr.rel (%p176) target = $region20
        $region19: #{tpu_custom_call.1} parent=11 // pred_region
          %s180 = ssub.s32 64, 64
          %181 = vsyncadd [#allocation7], %s180
          %s183 = sshll.u32 [#allocation8], 4
          %s184 = int_to_ptr.vmem [resolvable:$true] %s183
          %186 = dma.hbm_to_vmem [thread:$0]  %s2, 64, %s184, [#allocation7]
        $region20: #{tpu_custom_call.1} parent=11 // pred_fallthru
          _
        // Predicated region
        $region21: #{tpu_custom_call.1} parent=11 // pred_check
          %p187 = pneg %p106
        $region22: #{tpu_custom_call.1} parent=11 // pred_check_branch
          %189 = sbr.rel (%p187) target = $region24
        $region23: #{tpu_custom_call.1} parent=11 // pred_region
          %s191 = ssub.s32 8192, 8192
          %192 = vsyncadd [#allocation10], %s191
          %s193 = sshll.u32 [#allocation9], 4
          %s194 = int_to_ptr.vmem [resolvable:$true] %s193
          %199 = dma.hbm_to_vmem [thread:$0]  %s3, 8192, %s194, [#allocation10], 128, 128, 8
        $region24: #{tpu_custom_call.1} parent=11 // pred_fallthru
          _
        // Predicated region
        $region25: #{tpu_custom_call.1} parent=11 // pred_check
          %p200 = pneg %p127
        $region26: #{tpu_custom_call.1} parent=11 // pred_check_branch
          %202 = sbr.rel (%p200) target = $region28
        $region27: #{tpu_custom_call.1} parent=11 // pred_region
          _
        $region28: #{tpu_custom_call.1} parent=11 // pred_fallthru
          _
      $region12: #{tpu_custom_call.1} parent=5 // pred_fallthru
        _
      %p203 = scmp.lt.s32.totalorder %s17, 2
      // Predicated region
      $region29: #{tpu_custom_call.1} parent=5 // pred_check
        %p204 = pneg %p203
      $region30: #{tpu_custom_call.1} parent=5 // pred_check_branch
        %206 = sbr.rel (%p204) target = $region32
      $region31: #{tpu_custom_call.1} parent=5 // pred_region
        // Predicated region
        $region33: #{tpu_custom_call.1} parent=31 // pred_check
          %p207 = pneg %p37
        $region34: #{tpu_custom_call.1} parent=31 // pred_check_branch
          %209 = sbr.rel (%p207) target = $region36
        $region35: #{tpu_custom_call.1} parent=31 // pred_region
          %s210 = sand.u32 %s27, 1
          %s211 = scalar_lea.sflag [#allocation4], %s210
          %s212 = sand.u32 %s27, 1
          %s213 = smul.addr %s212, 32
          %s214 = scalar_lea.vmem [#allocation3], %s213
          %s216 = ssub.s32 512, 512
          %217 = vsyncadd %s211, %s216
          %s218 = smul.addr %s17, 2
          %s219 = smul.addr %s218, 128
          %s220 = scalar_lea.hbm %s0, %s219
          %s221 = sshll.u32 %s214, 4
          %s222 = int_to_ptr.vmem [resolvable:$true] %s221
          %227 = dma.hbm_to_vmem [thread:$0]  %s220, 512, %s222, %s211, 512, 256, 16
        $region36: #{tpu_custom_call.1} parent=31 // pred_fallthru
          _
      $region32: #{tpu_custom_call.1} parent=5 // pred_fallthru
        _
      %p228 = scmp.le.s32.totalorder 1, %s17
      %p229 = scmp.lt.s32.totalorder %s17, 3
      %p230 = pnand %p228, %p229
      %p231 = pneg %p230
      // Predicated region
      $region37: #{tpu_custom_call.1} parent=5 // pred_check
        _
      $region38: #{tpu_custom_call.1} parent=5 // pred_check_branch
        %233 = sbr.rel (%p230) target = $region40
      $region39: #{tpu_custom_call.1} parent=5 // pred_region
        %s234 = ssub.s32 %s17, 1
        %s235 = sand.u32 %s30, 1
        %s236 = scalar_lea.sflag [#allocation4], %s235
        %s237 = sand.u32 %s30, 1
        %s238 = smul.addr %s237, 32
        %s239 = scalar_lea.vmem [#allocation3], %s238
        // Predicated region
        $region41: #{tpu_custom_call.1} parent=39 // pred_check
          %p240 = pneg %p43
        $region42: #{tpu_custom_call.1} parent=39 // pred_check_branch
          %242 = sbr.rel (%p240) target = $region44
        $region43: #{tpu_custom_call.1} parent=39 // pred_region
          %243 = dma.done %s236, 512
        $region44: #{tpu_custom_call.1} parent=39 // pred_fallthru
          _
        // Predicated region
        $region45: #{tpu_custom_call.1} parent=39 // pred_check
          %p244 = pneg %p64
        $region46: #{tpu_custom_call.1} parent=39 // pred_check_branch
          %246 = sbr.rel (%p244) target = $region48
        $region47: #{tpu_custom_call.1} parent=39 // pred_region
          %247 = dma.done [#allocation7], 8192
        $region48: #{tpu_custom_call.1} parent=39 // pred_fallthru
          _
        // Predicated region
        $region49: #{tpu_custom_call.1} parent=39 // pred_check
          %p248 = pneg %p85
        $region50: #{tpu_custom_call.1} parent=39 // pred_check_branch
          %250 = sbr.rel (%p248) target = $region52
        $region51: #{tpu_custom_call.1} parent=39 // pred_region
          %251 = dma.done [#allocation7], 64
        $region52: #{tpu_custom_call.1} parent=39 // pred_fallthru
          _
        // Predicated region
        $region53: #{tpu_custom_call.1} parent=39 // pred_check
          %p252 = pneg %p106
        $region54: #{tpu_custom_call.1} parent=39 // pred_check_branch
          %254 = sbr.rel (%p252) target = $region56
        $region55: #{tpu_custom_call.1} parent=39 // pred_region
          %255 = dma.done [#allocation10], 8192
        $region56: #{tpu_custom_call.1} parent=39 // pred_fallthru
          _
        %s256 = sand.u32 %s30, 1
        %s257 = scalar_lea.sflag [#allocation4], %s256
        %s258 = sand.u32 %s30, 1
        %s259 = smul.addr %s258, 32
        %s260 = scalar_lea.vmem [#allocation3], %s259
        %p261 = pneg %p43
        %p262 = pneg %p40
        %p263 = pneg %p64
        %p264 = pneg %p61
        %p265 = pneg %p85
        %p266 = pneg %p82
        %p267 = pneg %p106
        %p268 = pneg %p103
        %p269 = pneg %p127
        %p270 = pneg %p124
        %p271 = pneg %p148
        %p272 = pneg %p145
        %p273 = scmp.eq.s32.totalorder %s22, 0
        // Predicated region
        $region57: #{tpu_custom_call.1} parent=39 // pred_check
          %p274 = pneg %p273
        $region58: #{tpu_custom_call.1} parent=39 // pred_check_branch
          %276 = sbr.rel (%p274) target = $region60
        $region59: #{tpu_custom_call.1} parent=39 // pred_region
          %277 = vst [vmem:[#allocation2] sm:$0xf] 0.0
        $region60: #{tpu_custom_call.1} parent=39 // pred_fallthru
          _
        %v278 = vld [vmem:[#allocation2] sm:$0xf]
        %v279 = vld [vmem:[%s239] sm:$0xff]
        %v280 = vld [vmem:[%s239 + $0x8] sm:$0xff]
        %v281 = vld [vmem:[%s239 + $0x10] sm:$0xff]
        %v282 = vld [vmem:[%s239 + $0x18] sm:$0xff]
        %v283 = vrot.slane %v279, 4
        %v284 = vadd.f32 %v279, %v283
        %v285 = vrot.slane %v284, 2
        %v286 = vadd.f32 %v284, %v285
        %v287 = vrot.slane %v286, 1
        %v288 = vadd.f32 %v286, %v287
        %v289 = vrot.slane %v280, 4
        %v290 = vadd.f32 %v280, %v289
        %v291 = vrot.slane %v290, 2
        %v292 = vadd.f32 %v290, %v291
        %v293 = vrot.slane %v292, 1
        %v294 = vadd.f32 %v292, %v293
        %v295 = vrot.slane %v281, 4
        %v296 = vadd.f32 %v281, %v295
        %v297 = vrot.slane %v296, 2
        %v298 = vadd.f32 %v296, %v297
        %v299 = vrot.slane %v298, 1
        %v300 = vadd.f32 %v298, %v299
        %v301 = vrot.slane %v282, 4
        %v302 = vadd.f32 %v282, %v301
        %v303 = vrot.slane %v302, 2
        %v304 = vadd.f32 %v302, %v303
        %v305 = vrot.slane %v304, 1
        %v306 = vadd.f32 %v304, %v305
        %v311 = vcombine.low %v288, %v294
        %v313 = vunpack.c.l.s4 1983009808
        %v314 = vunpack.c.0.s8 %v313
        %v315 = vlaneseq
        %v316 = vshrl.u32 %v315, 7
        %v317 = vsub.s32 %v314, %v316
        %v318 = vrot.slane %v311, %v317
        %v319 = vcombine.low %v300, %v306
        %v321 = vunpack.c.l.s4 1983009808
        %v322 = vunpack.c.0.s8 %v321
        %v323 = vlaneseq
        %v324 = vshrl.u32 %v323, 7
        %v325 = vsub.s32 %v322, %v324
        %v326 = vrot.slane %v319, %v325
        %vm327 = vcmask 1044484
        %v328 = vsel %vm327, %v318, %v318
        %vm329 = vcmask 1046534
        %v330 = vsel %vm329, %v318, %v328
        %v331 = vrot.slane %v326, 7
        %vm332 = vcmask 1041409
        %v333 = vsel %vm332, %v331, %v330
        %vm334 = vcmask 1043459
        %v335 = vsel %vm334, %v331, %v333
        %vm336 = vcmask 1045509
        %v337 = vsel %vm336, %v331, %v335
        %vm338 = vcmask 1047559
        %v339 = vsel %vm338, %v331, %v337
        %v341 = vadd.f32 %v278, %v339
        %342 = vst [vmem:[#allocation2] sm:$0xf] %v341
        %p343 = scmp.eq.s32.totalorder %s22, 1
        // Predicated region
        $region61: #{tpu_custom_call.1} parent=39 // pred_check
          %p344 = pneg %p343
        $region62: #{tpu_custom_call.1} parent=39 // pred_check_branch
          %346 = sbr.rel (%p344) target = $region64
        $region63: #{tpu_custom_call.1} parent=39 // pred_region
          %v347 = vld [vmem:[#allocation2] sm:$0xf]
          %v348 = vmul.f32 %v347, 0.0625
          %v351 = vunpack.c.l.s4 1983009808
          %v352 = vunpack.c.0.s8 %v351
          %v353 = vlaneseq
          %v354 = vshrl.u32 %v353, 7
          %v355 = vsub.s32 %v352, %v354
          %v356 = vrot.slane %v348, %v355
          %v357 = vcombine.high %v356, %v356
          %v360 = vpack.c.bf16 %v356, %v356
          %v361 = vpack.c.bf16 %v357, %v357
          %v362 = vld [vmem:[#allocation6] sm:$0xff]
          %v363 = vld [vmem:[#allocation6 + $0x8] sm:$0xff]
          %v364 = vld [vmem:[#allocation6 + $0x10] sm:$0xff]
          %v365 = vld [vmem:[#allocation6 + $0x18] sm:$0xff]
          %v366 = vld [vmem:[#allocation6 + $0x20] sm:$0xff]
          %v367 = vld [vmem:[#allocation6 + $0x28] sm:$0xff]
          %v368 = vld [vmem:[#allocation6 + $0x30] sm:$0xff]
          %v369 = vld [vmem:[#allocation6 + $0x38] sm:$0xff]
          %v370 = vld [vmem:[#allocation6 + $0x40] sm:$0xff]
          %v371 = vld [vmem:[#allocation6 + $0x48] sm:$0xff]
          %v372 = vld [vmem:[#allocation6 + $0x50] sm:$0xff]
          %v373 = vld [vmem:[#allocation6 + $0x58] sm:$0xff]
          %v374 = vld [vmem:[#allocation6 + $0x60] sm:$0xff]
          %v375 = vld [vmem:[#allocation6 + $0x68] sm:$0xff]
          %v376 = vld [vmem:[#allocation6 + $0x70] sm:$0xff]
          %v377 = vld [vmem:[#allocation6 + $0x78] sm:$0xff]
          %v378 = vld [vmem:[#allocation6 + $0x80] sm:$0xff]
          %v379 = vld [vmem:[#allocation6 + $0x88] sm:$0xff]
          %v380 = vld [vmem:[#allocation6 + $0x90] sm:$0xff]
          %v381 = vld [vmem:[#allocation6 + $0x98] sm:$0xff]
          %v382 = vld [vmem:[#allocation6 + $0xa0] sm:$0xff]
          %v383 = vld [vmem:[#allocation6 + $0xa8] sm:$0xff]
          %v384 = vld [vmem:[#allocation6 + $0xb0] sm:$0xff]
          %v385 = vld [vmem:[#allocation6 + $0xb8] sm:$0xff]
          %v386 = vld [vmem:[#allocation6 + $0xc0] sm:$0xff]
          %v387 = vld [vmem:[#allocation6 + $0xc8] sm:$0xff]
          %v388 = vld [vmem:[#allocation6 + $0xd0] sm:$0xff]
          %v389 = vld [vmem:[#allocation6 + $0xd8] sm:$0xff]
          %v390 = vld [vmem:[#allocation6 + $0xe0] sm:$0xff]
          %v391 = vld [vmem:[#allocation6 + $0xe8] sm:$0xff]
          %v392 = vld [vmem:[#allocation6 + $0xf0] sm:$0xff]
          %v393 = vld [vmem:[#allocation6 + $0xf8] sm:$0xff]
          %v394 = vld [vmem:[#allocation6 + $0x100] sm:$0xff]
          %v395 = vld [vmem:[#allocation6 + $0x108] sm:$0xff]
          %v396 = vld [vmem:[#allocation6 + $0x110] sm:$0xff]
          %v397 = vld [vmem:[#allocation6 + $0x118] sm:$0xff]
          %v398 = vld [vmem:[#allocation6 + $0x120] sm:$0xff]
          %v399 = vld [vmem:[#allocation6 + $0x128] sm:$0xff]
          %v400 = vld [vmem:[#allocation6 + $0x130] sm:$0xff]
          %v401 = vld [vmem:[#allocation6 + $0x138] sm:$0xff]
          %v402 = vld [vmem:[#allocation6 + $0x140] sm:$0xff]
          %v403 = vld [vmem:[#allocation6 + $0x148] sm:$0xff]
          %v404 = vld [vmem:[#allocation6 + $0x150] sm:$0xff]
          %v405 = vld [vmem:[#allocation6 + $0x158] sm:$0xff]
          %v406 = vld [vmem:[#allocation6 + $0x160] sm:$0xff]
          %v407 = vld [vmem:[#allocation6 + $0x168] sm:$0xff]
          %v408 = vld [vmem:[#allocation6 + $0x170] sm:$0xff]
          %v409 = vld [vmem:[#allocation6 + $0x178] sm:$0xff]
          %v410 = vld [vmem:[#allocation6 + $0x180] sm:$0xff]
          %v411 = vld [vmem:[#allocation6 + $0x188] sm:$0xff]
          %v412 = vld [vmem:[#allocation6 + $0x190] sm:$0xff]
          %v413 = vld [vmem:[#allocation6 + $0x198] sm:$0xff]
          %v414 = vld [vmem:[#allocation6 + $0x1a0] sm:$0xff]
          %v415 = vld [vmem:[#allocation6 + $0x1a8] sm:$0xff]
          %v416 = vld [vmem:[#allocation6 + $0x1b0] sm:$0xff]
          %v417 = vld [vmem:[#allocation6 + $0x1b8] sm:$0xff]
          %v418 = vld [vmem:[#allocation6 + $0x1c0] sm:$0xff]
          %v419 = vld [vmem:[#allocation6 + $0x1c8] sm:$0xff]
          %v420 = vld [vmem:[#allocation6 + $0x1d0] sm:$0xff]
          %v421 = vld [vmem:[#allocation6 + $0x1d8] sm:$0xff]
          %v422 = vld [vmem:[#allocation6 + $0x1e0] sm:$0xff]
          %v423 = vld [vmem:[#allocation6 + $0x1e8] sm:$0xff]
          %v424 = vld [vmem:[#allocation6 + $0x1f0] sm:$0xff]
          %v425 = vld [vmem:[#allocation6 + $0x1f8] sm:$0xff]
          %v426 = vld [vmem:[#allocation8] sm:$0xf]
          %v428 = vlaneseq
          %v429 = vshrl.u32 %v428, 7
          %v430 = vsub.s32 0, %v429
          %v431 = vrot.slane %v426, %v430
          %v432 = vlaneseq
          %v433 = vshrl.u32 %v432, 7
          %v434 = vsub.s32 1, %v433
          %v435 = vrot.slane %v426, %v434
          %v436 = vlaneseq
          %v437 = vshrl.u32 %v436, 7
          %v438 = vsub.s32 2, %v437
          %v439 = vrot.slane %v426, %v438
          %v440 = vlaneseq
          %v441 = vshrl.u32 %v440, 7
          %v442 = vsub.s32 3, %v441
          %v443 = vrot.slane %v426, %v442
          %v512 = vunpack.c.l.b16 %v362
          %v513 = vunpack.c.h.b16 %v362
          %v514 = vunpack.c.l.b16 %v363
          %v515 = vunpack.c.h.b16 %v363
          %v516 = vunpack.c.l.b16 %v364
          %v517 = vunpack.c.h.b16 %v364
          %v518 = vunpack.c.l.b16 %v365
          %v519 = vunpack.c.h.b16 %v365
          %v520 = vunpack.c.l.b16 %v366
          %v521 = vunpack.c.h.b16 %v366
          %v522 = vunpack.c.l.b16 %v367
          %v523 = vunpack.c.h.b16 %v367
          %v524 = vunpack.c.l.b16 %v368
          %v525 = vunpack.c.h.b16 %v368
          %v526 = vunpack.c.l.b16 %v369
          %v527 = vunpack.c.h.b16 %v369
          %v528 = vunpack.c.l.b16 %v370
          %v529 = vunpack.c.h.b16 %v370
          %v530 = vunpack.c.l.b16 %v371
          %v531 = vunpack.c.h.b16 %v371
          %v532 = vunpack.c.l.b16 %v372
          %v533 = vunpack.c.h.b16 %v372
          %v534 = vunpack.c.l.b16 %v373
          %v535 = vunpack.c.h.b16 %v373
          %v536 = vunpack.c.l.b16 %v374
          %v537 = vunpack.c.h.b16 %v374
          %v538 = vunpack.c.l.b16 %v375
          %v539 = vunpack.c.h.b16 %v375
          %v540 = vunpack.c.l.b16 %v376
          %v541 = vunpack.c.h.b16 %v376
          %v542 = vunpack.c.l.b16 %v377
          %v543 = vunpack.c.h.b16 %v377
          %v544 = vunpack.c.l.b16 %v378
          %v545 = vunpack.c.h.b16 %v378
          %v546 = vunpack.c.l.b16 %v379
          %v547 = vunpack.c.h.b16 %v379
          %v548 = vunpack.c.l.b16 %v380
          %v549 = vunpack.c.h.b16 %v380
          %v550 = vunpack.c.l.b16 %v381
          %v551 = vunpack.c.h.b16 %v381
          %v552 = vunpack.c.l.b16 %v382
          %v553 = vunpack.c.h.b16 %v382
          %v554 = vunpack.c.l.b16 %v383
          %v555 = vunpack.c.h.b16 %v383
          %v556 = vunpack.c.l.b16 %v384
          %v557 = vunpack.c.h.b16 %v384
          %v558 = vunpack.c.l.b16 %v385
          %v559 = vunpack.c.h.b16 %v385
          %v560 = vunpack.c.l.b16 %v386
          %v561 = vunpack.c.h.b16 %v386
          %v562 = vunpack.c.l.b16 %v387
          %v563 = vunpack.c.h.b16 %v387
          %v564 = vunpack.c.l.b16 %v388
          %v565 = vunpack.c.h.b16 %v388
          %v566 = vunpack.c.l.b16 %v389
          %v567 = vunpack.c.h.b16 %v389
          %v568 = vunpack.c.l.b16 %v390
          %v569 = vunpack.c.h.b16 %v390
          %v570 = vunpack.c.l.b16 %v391
          %v571 = vunpack.c.h.b16 %v391
          %v572 = vunpack.c.l.b16 %v392
          %v573 = vunpack.c.h.b16 %v392
          %v574 = vunpack.c.l.b16 %v393
          %v575 = vunpack.c.h.b16 %v393
          %v576 = vunpack.c.l.b16 %v394
          %v577 = vunpack.c.h.b16 %v394
          %v578 = vunpack.c.l.b16 %v395
          %v579 = vunpack.c.h.b16 %v395
          %v580 = vunpack.c.l.b16 %v396
          %v581 = vunpack.c.h.b16 %v396
          %v582 = vunpack.c.l.b16 %v397
          %v583 = vunpack.c.h.b16 %v397
          %v584 = vunpack.c.l.b16 %v398
          %v585 = vunpack.c.h.b16 %v398
          %v586 = vunpack.c.l.b16 %v399
          %v587 = vunpack.c.h.b16 %v399
          %v588 = vunpack.c.l.b16 %v400
          %v589 = vunpack.c.h.b16 %v400
          %v590 = vunpack.c.l.b16 %v401
          %v591 = vunpack.c.h.b16 %v401
          %v592 = vunpack.c.l.b16 %v402
          %v593 = vunpack.c.h.b16 %v402
          %v594 = vunpack.c.l.b16 %v403
          %v595 = vunpack.c.h.b16 %v403
          %v596 = vunpack.c.l.b16 %v404
          %v597 = vunpack.c.h.b16 %v404
          %v598 = vunpack.c.l.b16 %v405
          %v599 = vunpack.c.h.b16 %v405
          %v600 = vunpack.c.l.b16 %v406
          %v601 = vunpack.c.h.b16 %v406
          %v602 = vunpack.c.l.b16 %v407
          %v603 = vunpack.c.h.b16 %v407
          %v604 = vunpack.c.l.b16 %v408
          %v605 = vunpack.c.h.b16 %v408
          %v606 = vunpack.c.l.b16 %v409
          %v607 = vunpack.c.h.b16 %v409
          %v608 = vunpack.c.l.b16 %v410
          %v609 = vunpack.c.h.b16 %v410
          %v610 = vunpack.c.l.b16 %v411
          %v611 = vunpack.c.h.b16 %v411
          %v612 = vunpack.c.l.b16 %v412
          %v613 = vunpack.c.h.b16 %v412
          %v614 = vunpack.c.l.b16 %v413
          %v615 = vunpack.c.h.b16 %v413
          %v616 = vunpack.c.l.b16 %v414
          %v617 = vunpack.c.h.b16 %v414
          %v618 = vunpack.c.l.b16 %v415
          %v619 = vunpack.c.h.b16 %v415
          %v620 = vunpack.c.l.b16 %v416
          %v621 = vunpack.c.h.b16 %v416
          %v622 = vunpack.c.l.b16 %v417
          %v623 = vunpack.c.h.b16 %v417
          %v624 = vunpack.c.l.b16 %v418
          %v625 = vunpack.c.h.b16 %v418
          %v626 = vunpack.c.l.b16 %v419
          %v627 = vunpack.c.h.b16 %v419
          %v628 = vunpack.c.l.b16 %v420
          %v629 = vunpack.c.h.b16 %v420
          %v630 = vunpack.c.l.b16 %v421
          %v631 = vunpack.c.h.b16 %v421
          %v632 = vunpack.c.l.b16 %v422
          %v633 = vunpack.c.h.b16 %v422
          %v634 = vunpack.c.l.b16 %v423
          %v635 = vunpack.c.h.b16 %v423
          %v636 = vunpack.c.l.b16 %v424
          %v637 = vunpack.c.h.b16 %v424
          %v638 = vunpack.c.l.b16 %v425
          %v639 = vunpack.c.h.b16 %v425
          %v640 = vpack.c.b16 %v516, %v512
          %v641 = vpack.c.b16 %v517, %v513
          %v642 = vpack.c.b16 %v518, %v514
          %v643 = vpack.c.b16 %v519, %v515
          %v644 = vpack.c.b16 %v524, %v520
          %v645 = vpack.c.b16 %v525, %v521
          %v646 = vpack.c.b16 %v526, %v522
          %v647 = vpack.c.b16 %v527, %v523
          %v648 = vpack.c.b16 %v532, %v528
          %v649 = vpack.c.b16 %v533, %v529
          %v650 = vpack.c.b16 %v534, %v530
          %v651 = vpack.c.b16 %v535, %v531
          %v652 = vpack.c.b16 %v540, %v536
          %v653 = vpack.c.b16 %v541, %v537
          %v654 = vpack.c.b16 %v542, %v538
          %v655 = vpack.c.b16 %v543, %v539
          %v656 = vpack.c.b16 %v548, %v544
          %v657 = vpack.c.b16 %v549, %v545
          %v658 = vpack.c.b16 %v550, %v546
          %v659 = vpack.c.b16 %v551, %v547
          %v660 = vpack.c.b16 %v556, %v552
          %v661 = vpack.c.b16 %v557, %v553
          %v662 = vpack.c.b16 %v558, %v554
          %v663 = vpack.c.b16 %v559, %v555
          %v664 = vpack.c.b16 %v564, %v560
          %v665 = vpack.c.b16 %v565, %v561
          %v666 = vpack.c.b16 %v566, %v562
          %v667 = vpack.c.b16 %v567, %v563
          %v668 = vpack.c.b16 %v572, %v568
          %v669 = vpack.c.b16 %v573, %v569
          %v670 = vpack.c.b16 %v574, %v570
          %v671 = vpack.c.b16 %v575, %v571
          %v672 = vpack.c.b16 %v580, %v576
          %v673 = vpack.c.b16 %v581, %v577
          %v674 = vpack.c.b16 %v582, %v578
          %v675 = vpack.c.b16 %v583, %v579
          %v676 = vpack.c.b16 %v588, %v584
          %v677 = vpack.c.b16 %v589, %v585
          %v678 = vpack.c.b16 %v590, %v586
          %v679 = vpack.c.b16 %v591, %v587
          %v680 = vpack.c.b16 %v596, %v592
          %v681 = vpack.c.b16 %v597, %v593
          %v682 = vpack.c.b16 %v598, %v594
          %v683 = vpack.c.b16 %v599, %v595
          %v684 = vpack.c.b16 %v604, %v600
          %v685 = vpack.c.b16 %v605, %v601
          %v686 = vpack.c.b16 %v606, %v602
          %v687 = vpack.c.b16 %v607, %v603
          %v688 = vpack.c.b16 %v612, %v608
          %v689 = vpack.c.b16 %v613, %v609
          %v690 = vpack.c.b16 %v614, %v610
          %v691 = vpack.c.b16 %v615, %v611
          %v692 = vpack.c.b16 %v620, %v616
          %v693 = vpack.c.b16 %v621, %v617
          %v694 = vpack.c.b16 %v622, %v618
          %v695 = vpack.c.b16 %v623, %v619
          %v696 = vpack.c.b16 %v628, %v624
          %v697 = vpack.c.b16 %v629, %v625
          %v698 = vpack.c.b16 %v630, %v626
          %v699 = vpack.c.b16 %v631, %v627
          %v700 = vpack.c.b16 %v636, %v632
          %v701 = vpack.c.b16 %v637, %v633
          %v702 = vpack.c.b16 %v638, %v634
          %v703 = vpack.c.b16 %v639, %v635
          %768 = vmatprep.subr.bf16.mxu0 %v669
          %769 = vmatpush1.bf16.msra.mxu0 %v668
          %770 = vmatprep.subr.bf16.mxu0 %v665
          %771 = vmatpush1.bf16.msra.mxu0 %v664
          %772 = vmatprep.subr.bf16.mxu0 %v661
          %773 = vmatpush1.bf16.msra.mxu0 %v660
          %774 = vmatprep.subr.bf16.mxu0 %v657
          %775 = vmatpush1.bf16.msra.mxu0 %v656
          %776 = vmatprep.subr.bf16.mxu0 %v653
          %777 = vmatpush1.bf16.msra.mxu0 %v652
          %778 = vmatprep.subr.bf16.mxu0 %v649
          %779 = vmatpush1.bf16.msra.mxu0 %v648
          %780 = vmatprep.subr.bf16.mxu0 %v645
          %781 = vmatpush1.bf16.msra.mxu0 %v644
          %782 = vmatprep.subr.bf16.mxu0 %v641
          %783 = vmatpush1.bf16.msra.mxu0 %v640
          %784 = vmatprep.subr.bf16.mxu0 %v701
          %785 = vmatpush2.bf16.msra.mxu0 %v700
          %786 = vmatprep.subr.bf16.mxu0 %v697
          %787 = vmatpush2.bf16.msra.mxu0 %v696
          %788 = vmatprep.subr.bf16.mxu0 %v693
          %789 = vmatpush2.bf16.msra.mxu0 %v692
          %790 = vmatprep.subr.bf16.mxu0 %v689
          %791 = vmatpush2.bf16.msra.mxu0 %v688
          %792 = vmatprep.subr.bf16.mxu0 %v685
          %793 = vmatpush2.bf16.msra.mxu0 %v684
          %794 = vmatprep.subr.bf16.mxu0 %v681
          %795 = vmatpush2.bf16.msra.mxu0 %v680
          %796 = vmatprep.subr.bf16.mxu0 %v677
          %797 = vmatpush2.bf16.msra.mxu0 %v676
          %798 = vmatprep.subr.bf16.mxu0 %v673
          %799 = vmatpush2.bf16.msra.mxu0 %v672
          %800 = vmatprep.mubr.bf16.mxu0 %v361
          %801 = vmatmul.mubr.bf16.gmra.mxu0 %v360
          %v802 = vpop.f32.mrf.mxu0
          %v803 = vadd.f32 %v431, %v802
          %v804 = vpop.f32.mrf.mxu0
          %v805 = vadd.f32 %v435, %v804
          %v806 = vpop.f32.mrf.mxu0
          %v807 = vpop.f32.mrf.mxu0
          %808 = vdwg.mxu0
          %809 = vmatprep.subr.bf16.mxu0 %v671
          %810 = vmatpush1.bf16.msra.mxu0 %v670
          %811 = vmatprep.subr.bf16.mxu0 %v667
          %812 = vmatpush1.bf16.msra.mxu0 %v666
          %813 = vmatprep.subr.bf16.mxu0 %v663
          %814 = vmatpush1.bf16.msra.mxu0 %v662
          %815 = vmatprep.subr.bf16.mxu0 %v659
          %816 = vmatpush1.bf16.msra.mxu0 %v658
          %817 = vmatprep.subr.bf16.mxu0 %v655
          %818 = vmatpush1.bf16.msra.mxu0 %v654
          %819 = vmatprep.subr.bf16.mxu0 %v651
          %820 = vmatpush1.bf16.msra.mxu0 %v650
          %821 = vmatprep.subr.bf16.mxu0 %v647
          %822 = vmatpush1.bf16.msra.mxu0 %v646
          %823 = vmatprep.subr.bf16.mxu0 %v643
          %824 = vmatpush1.bf16.msra.mxu0 %v642
          %825 = vmatprep.subr.bf16.mxu0 %v703
          %826 = vmatpush2.bf16.msra.mxu0 %v702
          %827 = vmatprep.subr.bf16.mxu0 %v699
          %828 = vmatpush2.bf16.msra.mxu0 %v698
          %829 = vmatprep.subr.bf16.mxu0 %v695
          %830 = vmatpush2.bf16.msra.mxu0 %v694
          %831 = vmatprep.subr.bf16.mxu0 %v691
          %832 = vmatpush2.bf16.msra.mxu0 %v690
          %833 = vmatprep.subr.bf16.mxu0 %v687
          %834 = vmatpush2.bf16.msra.mxu0 %v686
          %835 = vmatprep.subr.bf16.mxu0 %v683
          %836 = vmatpush2.bf16.msra.mxu0 %v682
          %837 = vmatprep.subr.bf16.mxu0 %v679
          %838 = vmatpush2.bf16.msra.mxu0 %v678
          %839 = vmatprep.subr.bf16.mxu0 %v675
          %840 = vmatpush2.bf16.msra.mxu0 %v674
          %841 = vmatprep.mubr.bf16.mxu0 %v361
          %842 = vmatmul.mubr.bf16.gmra.mxu0 %v360
          %v843 = vpop.f32.mrf.mxu0
          %v844 = vadd.f32 %v439, %v843
          %v845 = vpop.f32.mrf.mxu0
          %v846 = vadd.f32 %v443, %v845
          %v847 = vpop.f32.mrf.mxu0
          %v848 = vpop.f32.mrf.mxu0
          %849 = vdwg.mxu0
          %vm850 = vcmp.gt.f32.partialorder %v803, 0.0
          %vm851 = vcmp.gt.f32.partialorder %v805, 0.0
          %vm852 = vcmp.gt.f32.partialorder %v844, 0.0
          %vm853 = vcmp.gt.f32.partialorder %v846, 0.0
          %v854 = vmin.f32 %v803, 0.0
          %v855 = vmin.f32 %v805, 0.0
          %v856 = vmin.f32 %v844, 0.0
          %v857 = vmin.f32 %v846, 0.0
          %v858 = vmul.f32 %v854, 1.442695
          %v859 = vpow.pop %v858
          %v860 = vmul.f32 %v855, 1.442695
          %v861 = vpow.pop %v860
          %v862 = vmul.f32 %v856, 1.442695
          %v863 = vpow.pop %v862
          %v864 = vmul.f32 %v857, 1.442695
          %v865 = vpow.pop %v864
          %v866 = vsub.f32 %v859, 1.0
          %v867 = vsub.f32 %v861, 1.0
          %v868 = vsub.f32 %v863, 1.0
          %v869 = vsub.f32 %v865, 1.0
          %v870 = vmul.f32 %v866, 1.6732632
          %v871 = vmul.f32 %v867, 1.6732632
          %v872 = vmul.f32 %v868, 1.6732632
          %v873 = vmul.f32 %v869, 1.6732632
          %v874 = vsel %vm850, %v803, %v870
          %v875 = vsel %vm851, %v805, %v871
          %v876 = vsel %vm852, %v844, %v872
          %v877 = vsel %vm853, %v846, %v873
          %v878 = vmul.f32 %v874, 1.050701
          %v879 = vmul.f32 %v875, 1.050701
          %v880 = vmul.f32 %v876, 1.050701
          %v881 = vmul.f32 %v877, 1.050701
          %v882 = vpack.c.bf16 %v878, %v878
          %v883 = vpack.c.bf16 %v879, %v879
          %v884 = vpack.c.bf16 %v880, %v880
          %v885 = vpack.c.bf16 %v881, %v881
          %v886 = vld [vmem:[#allocation9] sm:$0xff]
          %v887 = vld [vmem:[#allocation9 + $0x8] sm:$0xff]
          %v888 = vld [vmem:[#allocation9 + $0x10] sm:$0xff]
          %v889 = vld [vmem:[#allocation9 + $0x18] sm:$0xff]
          %v890 = vld [vmem:[#allocation9 + $0x20] sm:$0xff]
          %v891 = vld [vmem:[#allocation9 + $0x28] sm:$0xff]
          %v892 = vld [vmem:[#allocation9 + $0x30] sm:$0xff]
          %v893 = vld [vmem:[#allocation9 + $0x38] sm:$0xff]
          %v894 = vld [vmem:[#allocation9 + $0x40] sm:$0xff]
          %v895 = vld [vmem:[#allocation9 + $0x48] sm:$0xff]
          %v896 = vld [vmem:[#allocation9 + $0x50] sm:$0xff]
          %v897 = vld [vmem:[#allocation9 + $0x58] sm:$0xff]
          %v898 = vld [vmem:[#allocation9 + $0x60] sm:$0xff]
          %v899 = vld [vmem:[#allocation9 + $0x68] sm:$0xff]
          %v900 = vld [vmem:[#allocation9 + $0x70] sm:$0xff]
          %v901 = vld [vmem:[#allocation9 + $0x78] sm:$0xff]
          %v902 = vld [vmem:[#allocation9 + $0x80] sm:$0xff]
          %v903 = vld [vmem:[#allocation9 + $0x88] sm:$0xff]
          %v904 = vld [vmem:[#allocation9 + $0x90] sm:$0xff]
          %v905 = vld [vmem:[#allocation9 + $0x98] sm:$0xff]
          %v906 = vld [vmem:[#allocation9 + $0xa0] sm:$0xff]
          %v907 = vld [vmem:[#allocation9 + $0xa8] sm:$0xff]
          %v908 = vld [vmem:[#allocation9 + $0xb0] sm:$0xff]
          %v909 = vld [vmem:[#allocation9 + $0xb8] sm:$0xff]
          %v910 = vld [vmem:[#allocation9 + $0xc0] sm:$0xff]
          %v911 = vld [vmem:[#allocation9 + $0xc8] sm:$0xff]
          %v912 = vld [vmem:[#allocation9 + $0xd0] sm:$0xff]
          %v913 = vld [vmem:[#allocation9 + $0xd8] sm:$0xff]
          %v914 = vld [vmem:[#allocation9 + $0xe0] sm:$0xff]
          %v915 = vld [vmem:[#allocation9 + $0xe8] sm:$0xff]
          %v916 = vld [vmem:[#allocation9 + $0xf0] sm:$0xff]
          %v917 = vld [vmem:[#allocation9 + $0xf8] sm:$0xff]
          %v918 = vld [vmem:[#allocation9 + $0x100] sm:$0xff]
          %v919 = vld [vmem:[#allocation9 + $0x108] sm:$0xff]
          %v920 = vld [vmem:[#allocation9 + $0x110] sm:$0xff]
          %v921 = vld [vmem:[#allocation9 + $0x118] sm:$0xff]
          %v922 = vld [vmem:[#allocation9 + $0x120] sm:$0xff]
          %v923 = vld [vmem:[#allocation9 + $0x128] sm:$0xff]
          %v924 = vld [vmem:[#allocation9 + $0x130] sm:$0xff]
          %v925 = vld [vmem:[#allocation9 + $0x138] sm:$0xff]
          %v926 = vld [vmem:[#allocation9 + $0x140] sm:$0xff]
          %v927 = vld [vmem:[#allocation9 + $0x148] sm:$0xff]
          %v928 = vld [vmem:[#allocation9 + $0x150] sm:$0xff]
          %v929 = vld [vmem:[#allocation9 + $0x158] sm:$0xff]
          %v930 = vld [vmem:[#allocation9 + $0x160] sm:$0xff]
          %v931 = vld [vmem:[#allocation9 + $0x168] sm:$0xff]
          %v932 = vld [vmem:[#allocation9 + $0x170] sm:$0xff]
          %v933 = vld [vmem:[#allocation9 + $0x178] sm:$0xff]
          %v934 = vld [vmem:[#allocation9 + $0x180] sm:$0xff]
          %v935 = vld [vmem:[#allocation9 + $0x188] sm:$0xff]
          %v936 = vld [vmem:[#allocation9 + $0x190] sm:$0xff]
          %v937 = vld [vmem:[#allocation9 + $0x198] sm:$0xff]
          %v938 = vld [vmem:[#allocation9 + $0x1a0] sm:$0xff]
          %v939 = vld [vmem:[#allocation9 + $0x1a8] sm:$0xff]
          %v940 = vld [vmem:[#allocation9 + $0x1b0] sm:$0xff]
          %v941 = vld [vmem:[#allocation9 + $0x1b8] sm:$0xff]
          %v942 = vld [vmem:[#allocation9 + $0x1c0] sm:$0xff]
          %v943 = vld [vmem:[#allocation9 + $0x1c8] sm:$0xff]
          %v944 = vld [vmem:[#allocation9 + $0x1d0] sm:$0xff]
          %v945 = vld [vmem:[#allocation9 + $0x1d8] sm:$0xff]
          %v946 = vld [vmem:[#allocation9 + $0x1e0] sm:$0xff]
          %v947 = vld [vmem:[#allocation9 + $0x1e8] sm:$0xff]
          %v948 = vld [vmem:[#allocation9 + $0x1f0] sm:$0xff]
          %v949 = vld [vmem:[#allocation9 + $0x1f8] sm:$0xff]
          %v950 = vld [vmem:[%s4] sm:$0x3]
          %v952 = vlaneseq
          %v953 = vshrl.u32 %v952, 7
          %v954 = vsub.s32 0, %v953
          %v955 = vrot.slane %v950, %v954
          %v956 = vlaneseq
          %v957 = vshrl.u32 %v956, 7
          %v958 = vsub.s32 1, %v957
          %v959 = vrot.slane %v950, %v958
          %v1026 = vunpack.c.l.b16 %v886
          %v1027 = vunpack.c.h.b16 %v886
          %v1028 = vunpack.c.l.b16 %v887
          %v1029 = vunpack.c.h.b16 %v887
          %v1030 = vunpack.c.l.b16 %v888
          %v1031 = vunpack.c.h.b16 %v888
          %v1032 = vunpack.c.l.b16 %v889
          %v1033 = vunpack.c.h.b16 %v889
          %v1034 = vunpack.c.l.b16 %v890
          %v1035 = vunpack.c.h.b16 %v890
          %v1036 = vunpack.c.l.b16 %v891
          %v1037 = vunpack.c.h.b16 %v891
          %v1038 = vunpack.c.l.b16 %v892
          %v1039 = vunpack.c.h.b16 %v892
          %v1040 = vunpack.c.l.b16 %v893
          %v1041 = vunpack.c.h.b16 %v893
          %v1042 = vunpack.c.l.b16 %v894
          %v1043 = vunpack.c.h.b16 %v894
          %v1044 = vunpack.c.l.b16 %v895
          %v1045 = vunpack.c.h.b16 %v895
          %v1046 = vunpack.c.l.b16 %v896
          %v1047 = vunpack.c.h.b16 %v896
          %v1048 = vunpack.c.l.b16 %v897
          %v1049 = vunpack.c.h.b16 %v897
          %v1050 = vunpack.c.l.b16 %v898
          %v1051 = vunpack.c.h.b16 %v898
          %v1052 = vunpack.c.l.b16 %v899
          %v1053 = vunpack.c.h.b16 %v899
          %v1054 = vunpack.c.l.b16 %v900
          %v1055 = vunpack.c.h.b16 %v900
          %v1056 = vunpack.c.l.b16 %v901
          %v1057 = vunpack.c.h.b16 %v901
          %v1058 = vunpack.c.l.b16 %v902
          %v1059 = vunpack.c.h.b16 %v902
          %v1060 = vunpack.c.l.b16 %v903
          %v1061 = vunpack.c.h.b16 %v903
          %v1062 = vunpack.c.l.b16 %v904
          %v1063 = vunpack.c.h.b16 %v904
          %v1064 = vunpack.c.l.b16 %v905
          %v1065 = vunpack.c.h.b16 %v905
          %v1066 = vunpack.c.l.b16 %v906
          %v1067 = vunpack.c.h.b16 %v906
          %v1068 = vunpack.c.l.b16 %v907
          %v1069 = vunpack.c.h.b16 %v907
          %v1070 = vunpack.c.l.b16 %v908
          %v1071 = vunpack.c.h.b16 %v908
          %v1072 = vunpack.c.l.b16 %v909
          %v1073 = vunpack.c.h.b16 %v909
          %v1074 = vunpack.c.l.b16 %v910
          %v1075 = vunpack.c.h.b16 %v910
          %v1076 = vunpack.c.l.b16 %v911
          %v1077 = vunpack.c.h.b16 %v911
          %v1078 = vunpack.c.l.b16 %v912
          %v1079 = vunpack.c.h.b16 %v912
          %v1080 = vunpack.c.l.b16 %v913
          %v1081 = vunpack.c.h.b16 %v913
          %v1082 = vunpack.c.l.b16 %v914
          %v1083 = vunpack.c.h.b16 %v914
          %v1084 = vunpack.c.l.b16 %v915
          %v1085 = vunpack.c.h.b16 %v915
          %v1086 = vunpack.c.l.b16 %v916
          %v1087 = vunpack.c.h.b16 %v916
          %v1088 = vunpack.c.l.b16 %v917
          %v1089 = vunpack.c.h.b16 %v917
          %v1090 = vunpack.c.l.b16 %v918
          %v1091 = vunpack.c.h.b16 %v918
          %v1092 = vunpack.c.l.b16 %v919
          %v1093 = vunpack.c.h.b16 %v919
          %v1094 = vunpack.c.l.b16 %v920
          %v1095 = vunpack.c.h.b16 %v920
          %v1096 = vunpack.c.l.b16 %v921
          %v1097 = vunpack.c.h.b16 %v921
          %v1098 = vunpack.c.l.b16 %v922
          %v1099 = vunpack.c.h.b16 %v922
          %v1100 = vunpack.c.l.b16 %v923
          %v1101 = vunpack.c.h.b16 %v923
          %v1102 = vunpack.c.l.b16 %v924
          %v1103 = vunpack.c.h.b16 %v924
          %v1104 = vunpack.c.l.b16 %v925
          %v1105 = vunpack.c.h.b16 %v925
          %v1106 = vunpack.c.l.b16 %v926
          %v1107 = vunpack.c.h.b16 %v926
          %v1108 = vunpack.c.l.b16 %v927
          %v1109 = vunpack.c.h.b16 %v927
          %v1110 = vunpack.c.l.b16 %v928
          %v1111 = vunpack.c.h.b16 %v928
          %v1112 = vunpack.c.l.b16 %v929
          %v1113 = vunpack.c.h.b16 %v929
          %v1114 = vunpack.c.l.b16 %v930
          %v1115 = vunpack.c.h.b16 %v930
          %v1116 = vunpack.c.l.b16 %v931
          %v1117 = vunpack.c.h.b16 %v931
          %v1118 = vunpack.c.l.b16 %v932
          %v1119 = vunpack.c.h.b16 %v932
          %v1120 = vunpack.c.l.b16 %v933
          %v1121 = vunpack.c.h.b16 %v933
          %v1122 = vunpack.c.l.b16 %v934
          %v1123 = vunpack.c.h.b16 %v934
          %v1124 = vunpack.c.l.b16 %v935
          %v1125 = vunpack.c.h.b16 %v935
          %v1126 = vunpack.c.l.b16 %v936
          %v1127 = vunpack.c.h.b16 %v936
          %v1128 = vunpack.c.l.b16 %v937
          %v1129 = vunpack.c.h.b16 %v937
          %v1130 = vunpack.c.l.b16 %v938
          %v1131 = vunpack.c.h.b16 %v938
          %v1132 = vunpack.c.l.b16 %v939
          %v1133 = vunpack.c.h.b16 %v939
          %v1134 = vunpack.c.l.b16 %v940
          %v1135 = vunpack.c.h.b16 %v940
          %v1136 = vunpack.c.l.b16 %v941
          %v1137 = vunpack.c.h.b16 %v941
          %v1138 = vunpack.c.l.b16 %v942
          %v1139 = vunpack.c.h.b16 %v942
          %v1140 = vunpack.c.l.b16 %v943
          %v1141 = vunpack.c.h.b16 %v943
          %v1142 = vunpack.c.l.b16 %v944
          %v1143 = vunpack.c.h.b16 %v944
          %v1144 = vunpack.c.l.b16 %v945
          %v1145 = vunpack.c.h.b16 %v945
          %v1146 = vunpack.c.l.b16 %v946
          %v1147 = vunpack.c.h.b16 %v946
          %v1148 = vunpack.c.l.b16 %v947
          %v1149 = vunpack.c.h.b16 %v947
          %v1150 = vunpack.c.l.b16 %v948
          %v1151 = vunpack.c.h.b16 %v948
          %v1152 = vunpack.c.l.b16 %v949
          %v1153 = vunpack.c.h.b16 %v949
          %v1154 = vpack.c.b16 %v1028, %v1026
          %v1155 = vpack.c.b16 %v1029, %v1027
          %v1156 = vpack.c.b16 %v1032, %v1030
          %v1157 = vpack.c.b16 %v1033, %v1031
          %v1158 = vpack.c.b16 %v1036, %v1034
          %v1159 = vpack.c.b16 %v1037, %v1035
          %v1160 = vpack.c.b16 %v1040, %v1038
          %v1161 = vpack.c.b16 %v1041, %v1039
          %v1162 = vpack.c.b16 %v1044, %v1042
          %v1163 = vpack.c.b16 %v1045, %v1043
          %v1164 = vpack.c.b16 %v1048, %v1046
          %v1165 = vpack.c.b16 %v1049, %v1047
          %v1166 = vpack.c.b16 %v1052, %v1050
          %v1167 = vpack.c.b16 %v1053, %v1051
          %v1168 = vpack.c.b16 %v1056, %v1054
          %v1169 = vpack.c.b16 %v1057, %v1055
          %v1170 = vpack.c.b16 %v1060, %v1058
          %v1171 = vpack.c.b16 %v1061, %v1059
          %v1172 = vpack.c.b16 %v1064, %v1062
          %v1173 = vpack.c.b16 %v1065, %v1063
          %v1174 = vpack.c.b16 %v1068, %v1066
          %v1175 = vpack.c.b16 %v1069, %v1067
          %v1176 = vpack.c.b16 %v1072, %v1070
          %v1177 = vpack.c.b16 %v1073, %v1071
          %v1178 = vpack.c.b16 %v1076, %v1074
          %v1179 = vpack.c.b16 %v1077, %v1075
          %v1180 = vpack.c.b16 %v1080, %v1078
          %v1181 = vpack.c.b16 %v1081, %v1079
          %v1182 = vpack.c.b16 %v1084, %v1082
          %v1183 = vpack.c.b16 %v1085, %v1083
          %v1184 = vpack.c.b16 %v1088, %v1086
          %v1185 = vpack.c.b16 %v1089, %v1087
          %v1186 = vpack.c.b16 %v1092, %v1090
          %v1187 = vpack.c.b16 %v1093, %v1091
          %v1188 = vpack.c.b16 %v1096, %v1094
          %v1189 = vpack.c.b16 %v1097, %v1095
          %v1190 = vpack.c.b16 %v1100, %v1098
          %v1191 = vpack.c.b16 %v1101, %v1099
          %v1192 = vpack.c.b16 %v1104, %v1102
          %v1193 = vpack.c.b16 %v1105, %v1103
          %v1194 = vpack.c.b16 %v1108, %v1106
          %v1195 = vpack.c.b16 %v1109, %v1107
          %v1196 = vpack.c.b16 %v1112, %v1110
          %v1197 = vpack.c.b16 %v1113, %v1111
          %v1198 = vpack.c.b16 %v1116, %v1114
          %v1199 = vpack.c.b16 %v1117, %v1115
          %v1200 = vpack.c.b16 %v1120, %v1118
          %v1201 = vpack.c.b16 %v1121, %v1119
          %v1202 = vpack.c.b16 %v1124, %v1122
          %v1203 = vpack.c.b16 %v1125, %v1123
          %v1204 = vpack.c.b16 %v1128, %v1126
          %v1205 = vpack.c.b16 %v1129, %v1127
          %v1206 = vpack.c.b16 %v1132, %v1130
          %v1207 = vpack.c.b16 %v1133, %v1131
          %v1208 = vpack.c.b16 %v1136, %v1134
          %v1209 = vpack.c.b16 %v1137, %v1135
          %v1210 = vpack.c.b16 %v1140, %v1138
          %v1211 = vpack.c.b16 %v1141, %v1139
          %v1212 = vpack.c.b16 %v1144, %v1142
          %v1213 = vpack.c.b16 %v1145, %v1143
          %v1214 = vpack.c.b16 %v1148, %v1146
          %v1215 = vpack.c.b16 %v1149, %v1147
          %v1216 = vpack.c.b16 %v1152, %v1150
          %v1217 = vpack.c.b16 %v1153, %v1151
          %1282 = vmatprep.subr.bf16.mxu0 %v1169
          %1283 = vmatpush1.bf16.msra.mxu0 %v1168
          %1284 = vmatprep.subr.bf16.mxu0 %v1167
          %1285 = vmatpush1.bf16.msra.mxu0 %v1166
          %1286 = vmatprep.subr.bf16.mxu0 %v1165
          %1287 = vmatpush1.bf16.msra.mxu0 %v1164
          %1288 = vmatprep.subr.bf16.mxu0 %v1163
          %1289 = vmatpush1.bf16.msra.mxu0 %v1162
          %1290 = vmatprep.subr.bf16.mxu0 %v1161
          %1291 = vmatpush1.bf16.msra.mxu0 %v1160
          %1292 = vmatprep.subr.bf16.mxu0 %v1159
          %1293 = vmatpush1.bf16.msra.mxu0 %v1158
          %1294 = vmatprep.subr.bf16.mxu0 %v1157
          %1295 = vmatpush1.bf16.msra.mxu0 %v1156
          %1296 = vmatprep.subr.bf16.mxu0 %v1155
          %1297 = vmatpush1.bf16.msra.mxu0 %v1154
          %1298 = vmatprep.subr.bf16.mxu0 %v1185
          %1299 = vmatpush2.bf16.msra.mxu0 %v1184
          %1300 = vmatprep.subr.bf16.mxu0 %v1183
          %1301 = vmatpush2.bf16.msra.mxu0 %v1182
          %1302 = vmatprep.subr.bf16.mxu0 %v1181
          %1303 = vmatpush2.bf16.msra.mxu0 %v1180
          %1304 = vmatprep.subr.bf16.mxu0 %v1179
          %1305 = vmatpush2.bf16.msra.mxu0 %v1178
          %1306 = vmatprep.subr.bf16.mxu0 %v1177
          %1307 = vmatpush2.bf16.msra.mxu0 %v1176
          %1308 = vmatprep.subr.bf16.mxu0 %v1175
          %1309 = vmatpush2.bf16.msra.mxu0 %v1174
          %1310 = vmatprep.subr.bf16.mxu0 %v1173
          %1311 = vmatpush2.bf16.msra.mxu0 %v1172
          %1312 = vmatprep.subr.bf16.mxu0 %v1171
          %1313 = vmatpush2.bf16.msra.mxu0 %v1170
          %1314 = vmatprep.mubr.bf16.mxu0 %v883
          %1315 = vmatmul.mubr.bf16.gmra.mxu0 %v882
          %v1316 = vpop.f32.mrf.mxu0
          %v1317 = vadd.f32 %v955, %v1316
          %v1318 = vpop.f32.mrf.mxu0
          %v1319 = vadd.f32 %v959, %v1318
          %v1320 = vpop.f32.mrf.mxu0
          %v1321 = vpop.f32.mrf.mxu0
          %1322 = vdwg.mxu0
          %1323 = vmatprep.subr.bf16.mxu0 %v1201
          %1324 = vmatpush1.bf16.msra.mxu0 %v1200
          %1325 = vmatprep.subr.bf16.mxu0 %v1199
          %1326 = vmatpush1.bf16.msra.mxu0 %v1198
          %1327 = vmatprep.subr.bf16.mxu0 %v1197
          %1328 = vmatpush1.bf16.msra.mxu0 %v1196
          %1329 = vmatprep.subr.bf16.mxu0 %v1195
          %1330 = vmatpush1.bf16.msra.mxu0 %v1194
          %1331 = vmatprep.subr.bf16.mxu0 %v1193
          %1332 = vmatpush1.bf16.msra.mxu0 %v1192
          %1333 = vmatprep.subr.bf16.mxu0 %v1191
          %1334 = vmatpush1.bf16.msra.mxu0 %v1190
          %1335 = vmatprep.subr.bf16.mxu0 %v1189
          %1336 = vmatpush1.bf16.msra.mxu0 %v1188
          %1337 = vmatprep.subr.bf16.mxu0 %v1187
          %1338 = vmatpush1.bf16.msra.mxu0 %v1186
          %1339 = vmatprep.subr.bf16.mxu0 %v1217
          %1340 = vmatpush2.bf16.msra.mxu0 %v1216
          %1341 = vmatprep.subr.bf16.mxu0 %v1215
          %1342 = vmatpush2.bf16.msra.mxu0 %v1214
          %1343 = vmatprep.subr.bf16.mxu0 %v1213
          %1344 = vmatpush2.bf16.msra.mxu0 %v1212
          %1345 = vmatprep.subr.bf16.mxu0 %v1211
          %1346 = vmatpush2.bf16.msra.mxu0 %v1210
          %1347 = vmatprep.subr.bf16.mxu0 %v1209
          %1348 = vmatpush2.bf16.msra.mxu0 %v1208
          %1349 = vmatprep.subr.bf16.mxu0 %v1207
          %1350 = vmatpush2.bf16.msra.mxu0 %v1206
          %1351 = vmatprep.subr.bf16.mxu0 %v1205
          %1352 = vmatpush2.bf16.msra.mxu0 %v1204
          %1353 = vmatprep.subr.bf16.mxu0 %v1203
          %1354 = vmatpush2.bf16.msra.mxu0 %v1202
          %1355 = vmatprep.mubr.bf16.mxu0 %v885
          %1356 = vmatmul.mubr.bf16.gmra.mxu0 %v884
          %v1357 = vpop.f32.mrf.mxu0
          %v1358 = vadd.f32 %v1317, %v1357
          %v1359 = vpop.f32.mrf.mxu0
          %v1360 = vadd.f32 %v1319, %v1359
          %v1361 = vpop.f32.mrf.mxu0
          %v1362 = vpop.f32.mrf.mxu0
          %1363 = vdwg.mxu0
          %v1366 = vcombine.low %v1358, %v1360
          %v1368 = vunpack.c.l.s4 1983009808
          %v1369 = vunpack.c.0.s8 %v1368
          %v1370 = vlaneseq
          %v1371 = vshrl.u32 %v1370, 7
          %v1372 = vsub.s32 %v1369, %v1371
          %v1373 = vrot.slane %v1366, %v1372
          %1375 = vst [vmem:[#allocation11] sm:$0xf] %v1373
        $region64: #{tpu_custom_call.1} parent=39 // pred_fallthru
          _
        // Predicated region
        $region65: #{tpu_custom_call.1} parent=39 // pred_check
          %p1376 = pneg %p145
        $region66: #{tpu_custom_call.1} parent=39 // pred_check_branch
          %1378 = sbr.rel (%p1376) target = $region68
        $region67: #{tpu_custom_call.1} parent=39 // pred_region
          %s1380 = ssub.s32 64, 64
          %1381 = vsyncadd [#allocation5], %s1380
          %s1383 = sshll.u32 [#allocation11], 4
          %s1384 = int_to_ptr.vmem [resolvable:$true] %s1383
          %1386 = dma.vmem_to_hbm [thread:$0]  %s1384, 64, %s5, [#allocation5]
        $region68: #{tpu_custom_call.1} parent=39 // pred_fallthru
          _
        // Predicated region
        $region69: #{tpu_custom_call.1} parent=39 // pred_check
          %p1387 = pneg %p145
        $region70: #{tpu_custom_call.1} parent=39 // pred_check_branch
          %1389 = sbr.rel (%p1387) target = $region72
        $region71: #{tpu_custom_call.1} parent=39 // pred_region
          %1390 = dma.done [#allocation5], 64
        $region72: #{tpu_custom_call.1} parent=39 // pred_fallthru
          _
      $region40: #{tpu_custom_call.1} parent=5 // pred_fallthru
        _
      %p1391 = scmp.le.s32.totalorder 2, %s17
      // Predicated region
      $region73: #{tpu_custom_call.1} parent=5 // pred_check
        %p1392 = pneg %p1391
      $region74: #{tpu_custom_call.1} parent=5 // pred_check_branch
        %1394 = sbr.rel (%p1392) target = $region76
      $region75: #{tpu_custom_call.1} parent=5 // pred_region
        %s1395 = ssub.s32 %s17, 2
      $region76: #{tpu_custom_call.1} parent=5 // pred_fallthru
        _
    $region6: #{tpu_custom_call.1} parent=1 // loop_footer
      %s21 = sadd.s32 1, %s17
    $region7: #{tpu_custom_call.1} parent=1 // loop_footer_branch
      %16 = sbr.rel target = $region3
    $region8: #{tpu_custom_call.1} parent=1 // loop_exit
      _
    %1396 = vsyncpa [#allocation4], 1
    %s1397 = scalar_lea.sflag [#allocation4], 1
    %1398 = vsyncpa %s1397, 1
    %1399 = vsyncpa [#allocation7], 1
    %1400 = vsyncpa [#allocation10], 1
    %1401 = vsyncpa [#allocation5], 1
    %s1402 = scalar_lea.sflag [#allocation5], 1
    %1403 = vsyncpa %s1402, 1

</llo_original>
